<compile_context>
chip_gen: v6e
topology: v6e:2x2x1
jax: 0.10.0
libtpu: 0.0.40
codegen_flags: <defaults>
</compile_context>

<pallas_src>
import functools

import jax
import jax.numpy as jnp
from jax import lax
from jax.experimental import pallas as pl
from jax.experimental.pallas import tpu as pltpu


def _round_up(x, m):
    return ((x + m - 1) // m) * m


def _vmem_limit_bytes():
    # Generation-aware scoped-VMEM limit: ~3/4 of physical capacity
    # (v7x: 64 MiB -> 48 MiB, v5e/v6e: 128 MiB -> 96 MiB).
    cap = 64 * 1024 * 1024
    try:
        cap = int(getattr(pltpu.get_tpu_info(), "vmem_capacity_bytes", cap))
    except Exception:
        pass
    return max(16 * 1024 * 1024, (cap * 3) // 4)


def _choose_tile_n(n, d, resident_bytes, vmem_limit):
    # Byte-budgeted row tile: ~4 MiB of f32 per streamed X tile (double
    # buffered), leaving the resident accumulators / projection plus ~25%
    # headroom inside the scoped VMEM limit.
    headroom = vmem_limit // 4
    avail = max(vmem_limit - resident_bytes - headroom, 512 * 1024)
    target_tile_bytes = min(4 * 1024 * 1024, avail // 2)
    tn = max(8, (target_tile_bytes // (4 * d) // 8) * 8)
    return min(tn, _round_up(n, 8))


# ---------------------------------------------------------------------------
# Kernel 1 (fit, single pass): column sum + pilot-shifted Gram, fused.
#   sum  += sum_rows(x - pilot)                (1, D) accumulator per shard
#   gram += (x - pilot)^T (x - pilot)          (D, D) accumulator per shard
#   (dot_general contracting dim 0 -> native transposed-LHS MXU matmul,
#    no XLU transpose / extra VMEM copy)
# ---------------------------------------------------------------------------
def _fit_kernel(x_ref, pilot_ref, sum_ref, gram_ref, *,
                n, tile_n, blocks_per_shard, matmul_dtype):
    c = pl.program_id(0)          # TensorCore shard axis ("parallel")
    i = pl.program_id(1)          # row-block index within shard ("arbitrary")

    @pl.when(i == 0)
    def _():
        sum_ref[...] = jnp.zeros_like(sum_ref)
        gram_ref[...] = jnp.zeros_like(gram_ref)

    v = c * blocks_per_shard + i          # virtual global row-block index
    row_base = v * tile_n

    xs = x_ref[...] - pilot_ref[...]      # pilot-shifted rows, f32 (tile_n, d)

    def _accum(xv):
        sum_ref[...] += jnp.sum(xv, axis=0, keepdims=True)
        xm = xv.astype(matmul_dtype)      # bf16 option: f32 accumulation kept
        gram_ref[...] += lax.dot_general(
            xm, xm,
            dimension_numbers=(((0,), (0,)), ((), ())),
            preferred_element_type=jnp.float32,
        )

    # Interior (full) row blocks: unmasked fast path.
    @pl.when(row_base + tile_n <= n)
    def _():
        _accum(xs)

    # Tail (partial or phantom) blocks: mask rows >= n to zero contribution.
    @pl.when(row_base + tile_n > n)
    def _():
        rows = row_base + lax.broadcasted_iota(jnp.int32, (tile_n, 1), 0)
        _accum(jnp.where(rows < n, xs, 0.0))


def pca_fit_stats(x, *, matmul_dtype=jnp.float32, num_shards=2):
    """Single streamed pass over X -> (mean (1,D), covariance (D,D)), f32."""
    x = jnp.asarray(x, jnp.float32)
    n, d = x.shape
    pilot = x[0:1, :]                                   # (1, D) pilot shift

    vmem_limit = _vmem_limit_bytes()
    # Resident per shard: (D,D) gram + (1,D) sum + (1,D) pilot.
    resident = d * d * 4 + 2 * d * 4
    # TODO(synk): for very large D the resident (D,D) accumulator should be
    # blocked over (D_i, D_j) grid axes instead of kept whole-resident.
    tn = _choose_tile_n(n, d, resident, vmem_limit)
    nt = pl.cdiv(n, tn)                                 # real row blocks
    shards = max(1, min(num_shards, nt))
    bps = pl.cdiv(nt, shards)                           # blocks per shard

    def x_index(c, i):
        # Clamp the virtual block index so the trailing phantom block of an
        # odd split never DMAs out of bounds (its rows are masked in-kernel).
        return (jnp.minimum(c * bps + i, nt - 1), 0)

    kernel = functools.partial(
        _fit_kernel, n=n, tile_n=tn, blocks_per_shard=bps,
        matmul_dtype=matmul_dtype)

    part_sum, part_gram = pl.pallas_call(
        kernel,
        out_shape=(
            jax.ShapeDtypeStruct((shards, 1, d), jnp.float32),
            jax.ShapeDtypeStruct((shards, d, d), jnp.float32),
        ),
        grid=(shards, bps),
        in_specs=[
            pl.BlockSpec((tn, d), x_index),
            pl.BlockSpec((1, d), lambda c, i: (0, 0)),
        ],
        out_specs=(
            pl.BlockSpec((None, 1, d), lambda c, i: (c, 0, 0)),
            pl.BlockSpec((None, d, d), lambda c, i: (c, 0, 0)),
        ),
        compiler_params=pltpu.CompilerParams(
            dimension_semantics=("parallel", "arbitrary"),
            vmem_limit_bytes=vmem_limit,
        ),
        cost_estimate=pl.CostEstimate(
            flops=2 * n * d * d + 2 * n * d,
            transcendentals=0,
            bytes_accessed=(n * d + shards * (d * d + d) + d) * 4,
        ),
    )(x, pilot)

    col_sum = jnp.sum(part_sum, axis=0)                 # (1, D)
    gram = jnp.sum(part_gram, axis=0)                   # (D, D)
    delta = col_sum / n                                 # mean of (x - pilot)
    mean = pilot + delta                                # (1, D)
    # Population covariance (1/n), matching the torch reference.
    cov = gram / n - delta.T @ delta
    return mean, cov


# ---------------------------------------------------------------------------
# Kernel 2 (transform): out = X @ P - (mean @ P), exact (n, k) output.
# ---------------------------------------------------------------------------
def _transform_kernel(x_ref, proj_ref, bias_ref, out_ref):
    out_ref[...] = (
        jnp.dot(x_ref[...].astype(proj_ref.dtype), proj_ref[...],
                preferred_element_type=jnp.float32)
        - bias_ref[...]
    ).astype(out_ref.dtype)


def pca_transform(x, mean, proj_mat, *, matmul_dtype=jnp.float32):
    x = jnp.asarray(x, jnp.float32)
    n, d = x.shape
    k = proj_mat.shape[1]
    proj = proj_mat.astype(matmul_dtype)
    # Fold centering into a bias: (X - mean) @ P == X @ P - (mean @ P).
    bias = jnp.dot(mean.astype(jnp.float32),
                   proj_mat.astype(jnp.float32))        # (1, k), tiny

    vmem_limit = _vmem_limit_bytes()
    resident = d * k * jnp.dtype(matmul_dtype).itemsize + k * 4
    # TODO(synk): for very large D*K the resident projection should be tiled
    # over an extra output-column grid axis.
    tn = _choose_tile_n(n, d, resident, vmem_limit)

    return pl.pallas_call(
        _transform_kernel,
        out_shape=jax.ShapeDtypeStruct((n, k), jnp.float32),
        grid=(pl.cdiv(n, tn),),
        in_specs=[
            pl.BlockSpec((tn, d), lambda i: (i, 0)),
            pl.BlockSpec((d, k), lambda i: (0, 0)),
            pl.BlockSpec((1, k), lambda i: (0, 0)),
        ],
        out_specs=pl.BlockSpec((tn, k), lambda i: (i, 0)),
        compiler_params=pltpu.CompilerParams(
            dimension_semantics=("parallel",),
            vmem_limit_bytes=vmem_limit,
        ),
        cost_estimate=pl.CostEstimate(
            flops=2 * n * d * k,
            transcendentals=0,
            bytes_accessed=(n * d + d * k + k + n * k) * 4,
        ),
    )(x, proj, bias)


# ---------------------------------------------------------------------------
# Module-equivalent wrapper
# ---------------------------------------------------------------------------
class PCA:
    """Pallas-TPU PCA matching the torch reference (population covariance,
    eigenvectors sorted by |eigenvalue| descending)."""

    def __init__(self, output_dim, matmul_dtype=jnp.float32):
        # matmul_dtype=jnp.bfloat16 gives 2-4x MXU throughput for large-D,
        # compute-bound fits/transforms (accumulation stays float32).
        self.output_dim = output_dim
        self.matmul_dtype = matmul_dtype
        self.mean = None
        self.proj_mat = None

    def fit(self, x):
        mean, cov = pca_fit_stats(x, matmul_dtype=self.matmul_dtype)
        # TODO(synk): eigendecomposition (torch.eig) has no Pallas equivalent;
        # covariance is symmetric, so jnp.linalg.eigh + |lambda| descending
        # sort matches the torch.eig + norm + argsort semantics.
        eigenvalues, eigenvectors = jnp.linalg.eigh(cov)
        idx = jnp.argsort(-jnp.abs(eigenvalues))
        self.mean = mean
        self.proj_mat = eigenvectors[:, idx][:, : self.output_dim]

    def transform(self, x):
        return pca_transform(x, self.mean, self.proj_mat,
                             matmul_dtype=self.matmul_dtype)

    def forward(self, x):
        self.fit(x)
        return self.transform(x)

    __call__ = forward


# ---------------------------------------------------------------------------
# Demo / smoke test
# ---------------------------------------------------------------------------
if __name__ == "__main__":
    key = jax.random.PRNGKey(0)
    N, D, K = 64, 32, 8
    # Non-zero mean exercises the centering / pilot-shifted single-pass fit.
    x = jax.random.normal(key, (N, D), dtype=jnp.float32) + 3.0

    pca = PCA(output_dim=K)
    x_down = jax.block_until_ready(pca(x))

    assert x_down.shape == (N, K), x_down.shape
    assert bool(jnp.all(jnp.isfinite(x_down)))

    # Fit statistics vs pure-JAX reference.
    mean_ref = jnp.mean(x, axis=0, keepdims=True)
    xc = x - mean_ref
    cov_ref = xc.T @ xc / N
    mean_pallas, cov_pallas = pca_fit_stats(x)
    assert bool(jnp.max(jnp.abs(mean_pallas - mean_ref)) < 1e-4)
    assert bool(jnp.max(jnp.abs(cov_pallas - cov_ref)) < 1e-3)

    # Transform vs reference (eigenvector sign is arbitrary -> up to sign).
    w, v = jnp.linalg.eigh(cov_ref)
    order = jnp.argsort(-jnp.abs(w))
    proj_ref = v[:, order][:, :K]
    ref = xc @ proj_ref
    col_err = jnp.minimum(
        jnp.max(jnp.abs(x_down - ref), axis=0),
        jnp.max(jnp.abs(x_down + ref), axis=0),
    )
    assert bool(jnp.all(col_err < 2e-3)), col_err

    print("KERNEL_OK")
</pallas_src>

<mosaic_0001>
module attributes {stable_mosaic.version = 11 : i64} {
  func.func @_fit_kernel(%arg0: i32, %arg1: i32, %arg2: memref<64x32xf32, #tpu.memory_space<vmem>>, %arg3: memref<1x32xf32, #tpu.memory_space<vmem>>, %arg4: memref<1x1x32xf32, #tpu.memory_space<vmem>>, %arg5: memref<1x32x32xf32, #tpu.memory_space<vmem>>) attributes {dimension_semantics = [#tpu.dimension_semantics<parallel>, #tpu.dimension_semantics<arbitrary>], iteration_bounds = array<i64: 1, 1>, scalar_prefetch = 0 : i64, scratch_operands = 0 : i64, tpu.core_type = #tpu.core_type<tc>, window_params = [{transform_indices = @transform_0, window_bounds = array<i64: 64, 32>}, {pipeline_mode = #tpu.pipeline_mode<synchronous>, transform_indices = @transform_1, window_bounds = array<i64: 1, 32>}, {transform_indices = @transform_2, window_bounds = array<i64: 1, 1, 32>}, {transform_indices = @transform_3, window_bounds = array<i64: 1, 32, 32>}]} {
    %c0_i32 = arith.constant 0 : i32
    %0 = arith.cmpi eq, %arg1, %c0_i32 : i32
    %1 = arith.extui %0 : i1 to i32
    %c0_i32_0 = arith.constant 0 : i32
    %2 = arith.cmpi ne, %1, %c0_i32_0 : i32
    scf.if %2 {
      %cst = arith.constant 0.000000e+00 : f32
      %18 = vector.broadcast %cst : f32 to vector<1x32xf32>
      %c0_10 = arith.constant 0 : index
      %c0_11 = arith.constant 0 : index
      %c0_12 = arith.constant 0 : index
      %19 = vector.load %arg4[%c0_10, %c0_11, %c0_12] : memref<1x1x32xf32, #tpu.memory_space<vmem>>, vector<1x1x32xf32>
      %20 = vector.shape_cast %19 : vector<1x1x32xf32> to vector<1x32xf32>
      %21 = vector.shape_cast %18 : vector<1x32xf32> to vector<1x1x32xf32>
      tpu.vector_store %arg4[%c0_10, %c0_11, %c0_12], %21 {strides = array<i32>} : memref<1x1x32xf32, #tpu.memory_space<vmem>>, vector<1x1x32xf32>,
      %cst_13 = arith.constant 0.000000e+00 : f32
      %22 = vector.broadcast %cst_13 : f32 to vector<32x32xf32>
      %c0_14 = arith.constant 0 : index
      %c0_15 = arith.constant 0 : index
      %c0_16 = arith.constant 0 : index
      %23 = vector.load %arg5[%c0_14, %c0_15, %c0_16] : memref<1x32x32xf32, #tpu.memory_space<vmem>>, vector<1x32x32xf32>
      %24 = vector.shape_cast %23 : vector<1x32x32xf32> to vector<32x32xf32>
      %25 = vector.shape_cast %22 : vector<32x32xf32> to vector<1x32x32xf32>
      tpu.vector_store %arg5[%c0_14, %c0_15, %c0_16], %25 {strides = array<i32>} : memref<1x32x32xf32, #tpu.memory_space<vmem>>, vector<1x32x32xf32>,
    } else {
    }
    %c1_i32 = arith.constant 1 : i32
    %3 = arith.muli %arg0, %c1_i32 : i32
    %4 = arith.addi %3, %arg1 : i32
    %c64_i32 = arith.constant 64 : i32
    %5 = arith.muli %4, %c64_i32 : i32
    %c0 = arith.constant 0 : index
    %c0_1 = arith.constant 0 : index
    %6 = vector.load %arg2[%c0, %c0_1] : memref<64x32xf32, #tpu.memory_space<vmem>>, vector<64x32xf32>
    %c0_2 = arith.constant 0 : index
    %c0_3 = arith.constant 0 : index
    %7 = vector.load %arg3[%c0_2, %c0_3] : memref<1x32xf32, #tpu.memory_space<vmem>>, vector<1x32xf32>
    %8 = vector.broadcast %7 : vector<1x32xf32> to vector<64x32xf32>
    %9 = arith.subf %6, %8 : vector<64x32xf32>
    %c64_i32_4 = arith.constant 64 : i32
    %10 = arith.addi %5, %c64_i32_4 : i32
    %c64_i32_5 = arith.constant 64 : i32
    %11 = arith.cmpi sle, %10, %c64_i32_5 : i32
    %12 = arith.extui %11 : i1 to i32
    %c0_i32_6 = arith.constant 0 : i32
    %13 = arith.cmpi ne, %12, %c0_i32_6 : i32
    scf.if %13 {
      %c0_10 = arith.constant 0 : index
      %c0_11 = arith.constant 0 : index
      %c0_12 = arith.constant 0 : index
      %18 = vector.load %arg4[%c0_10, %c0_11, %c0_12] : memref<1x1x32xf32, #tpu.memory_space<vmem>>, vector<1x1x32xf32>
      %19 = vector.shape_cast %18 : vector<1x1x32xf32> to vector<1x32xf32>
      %cst = arith.constant dense<0.000000e+00> : vector<32xf32>
      %20 = vector.multi_reduction <add>, %9, %cst [0] : vector<64x32xf32> to vector<32xf32>
      %21 = vector.shape_cast %20 : vector<32xf32> to vector<1x32xf32>
      %22 = arith.addf %19, %21 : vector<1x32xf32>
      %c0_13 = arith.constant 0 : index
      %c0_14 = arith.constant 0 : index
      %c0_15 = arith.constant 0 : index
      %23 = vector.load %arg4[%c0_13, %c0_14, %c0_15] : memref<1x1x32xf32, #tpu.memory_space<vmem>>, vector<1x1x32xf32>
      %24 = vector.shape_cast %23 : vector<1x1x32xf32> to vector<1x32xf32>
      %25 = vector.shape_cast %22 : vector<1x32xf32> to vector<1x1x32xf32>
      tpu.vector_store %arg4[%c0_13, %c0_14, %c0_15], %25 {strides = array<i32>} : memref<1x1x32xf32, #tpu.memory_space<vmem>>, vector<1x1x32xf32>,
      %c0_16 = arith.constant 0 : index
      %c0_17 = arith.constant 0 : index
      %c0_18 = arith.constant 0 : index
      %26 = vector.load %arg5[%c0_16, %c0_17, %c0_18] : memref<1x32x32xf32, #tpu.memory_space<vmem>>, vector<1x32x32xf32>
      %27 = vector.shape_cast %26 : vector<1x32x32xf32> to vector<32x32xf32>
      %cst_19 = arith.constant dense<0.000000e+00> : vector<32x32xf32>
      %28 = tpu.matmul %9, %9, %cst_19 {dimension_numbers = #tpu.dot_dimension_numbers<[0], [0], [1], [1], [0, 1, 1, 1], [], []>} : vector<64x32xf32>, vector<64x32xf32>, vector<32x32xf32> -> vector<32x32xf32>
      %29 = arith.addf %27, %28 : vector<32x32xf32>
      %c0_20 = arith.constant 0 : index
      %c0_21 = arith.constant 0 : index
      %c0_22 = arith.constant 0 : index
      %30 = vector.load %arg5[%c0_20, %c0_21, %c0_22] : memref<1x32x32xf32, #tpu.memory_space<vmem>>, vector<1x32x32xf32>
      %31 = vector.shape_cast %30 : vector<1x32x32xf32> to vector<32x32xf32>
      %32 = vector.shape_cast %29 : vector<32x32xf32> to vector<1x32x32xf32>
      tpu.vector_store %arg5[%c0_20, %c0_21, %c0_22], %32 {strides = array<i32>} : memref<1x32x32xf32, #tpu.memory_space<vmem>>, vector<1x32x32xf32>,
    } else {
    }
    %c64_i32_7 = arith.constant 64 : i32
    %14 = arith.addi %5, %c64_i32_7 : i32
    %c64_i32_8 = arith.constant 64 : i32
    %15 = arith.cmpi sgt, %14, %c64_i32_8 : i32
    %16 = arith.extui %15 : i1 to i32
    %c0_i32_9 = arith.constant 0 : i32
    %17 = arith.cmpi ne, %16, %c0_i32_9 : i32
    scf.if %17 {
      %18 = tpu.iota {dimensions = array<i32: 0>} : vector<64x1xi32>
      %19 = vector.broadcast %5 : i32 to vector<64x1xi32>
      %20 = arith.addi %19, %18 : vector<64x1xi32>
      %c64_i32_10 = arith.constant 64 : i32
      %21 = vector.broadcast %c64_i32_10 : i32 to vector<64x1xi32>
      %22 = arith.cmpi slt, %20, %21 : vector<64x1xi32>
      %cst = arith.constant 0.000000e+00 : f32
      %23 = vector.shape_cast %22 : vector<64x1xi1> to vector<64x1xi1>
      %24 = vector.broadcast %23 : vector<64x1xi1> to vector<64x32xi1>
      %25 = vector.broadcast %cst : f32 to vector<64x32xf32>
      %26 = arith.select %24, %9, %25 : vector<64x32xi1>, vector<64x32xf32>
      %c0_11 = arith.constant 0 : index
      %c0_12 = arith.constant 0 : index
      %c0_13 = arith.constant 0 : index
      %27 = vector.load %arg4[%c0_11, %c0_12, %c0_13] : memref<1x1x32xf32, #tpu.memory_space<vmem>>, vector<1x1x32xf32>
      %28 = vector.shape_cast %27 : vector<1x1x32xf32> to vector<1x32xf32>
      %cst_14 = arith.constant dense<0.000000e+00> : vector<32xf32>
      %29 = vector.multi_reduction <add>, %26, %cst_14 [0] : vector<64x32xf32> to vector<32xf32>
      %30 = vector.shape_cast %29 : vector<32xf32> to vector<1x32xf32>
      %31 = arith.addf %28, %30 : vector<1x32xf32>
      %c0_15 = arith.constant 0 : index
      %c0_16 = arith.constant 0 : index
      %c0_17 = arith.constant 0 : index
      %32 = vector.load %arg4[%c0_15, %c0_16, %c0_17] : memref<1x1x32xf32, #tpu.memory_space<vmem>>, vector<1x1x32xf32>
      %33 = vector.shape_cast %32 : vector<1x1x32xf32> to vector<1x32xf32>
      %34 = vector.shape_cast %31 : vector<1x32xf32> to vector<1x1x32xf32>
      tpu.vector_store %arg4[%c0_15, %c0_16, %c0_17], %34 {strides = array<i32>} : memref<1x1x32xf32, #tpu.memory_space<vmem>>, vector<1x1x32xf32>,
      %c0_18 = arith.constant 0 : index
      %c0_19 = arith.constant 0 : index
      %c0_20 = arith.constant 0 : index
      %35 = vector.load %arg5[%c0_18, %c0_19, %c0_20] : memref<1x32x32xf32, #tpu.memory_space<vmem>>, vector<1x32x32xf32>
      %36 = vector.shape_cast %35 : vector<1x32x32xf32> to vector<32x32xf32>
      %cst_21 = arith.constant dense<0.000000e+00> : vector<32x32xf32>
      %37 = tpu.matmul %26, %26, %cst_21 {dimension_numbers = #tpu.dot_dimension_numbers<[0], [0], [1], [1], [0, 1, 1, 1], [], []>} : vector<64x32xf32>, vector<64x32xf32>, vector<32x32xf32> -> vector<32x32xf32>
      %38 = arith.addf %36, %37 : vector<32x32xf32>
      %c0_22 = arith.constant 0 : index
      %c0_23 = arith.constant 0 : index
      %c0_24 = arith.constant 0 : index
      %39 = vector.load %arg5[%c0_22, %c0_23, %c0_24] : memref<1x32x32xf32, #tpu.memory_space<vmem>>, vector<1x32x32xf32>
      %40 = vector.shape_cast %39 : vector<1x32x32xf32> to vector<32x32xf32>
      %41 = vector.shape_cast %38 : vector<32x32xf32> to vector<1x32x32xf32>
      tpu.vector_store %arg5[%c0_22, %c0_23, %c0_24], %41 {strides = array<i32>} : memref<1x32x32xf32, #tpu.memory_space<vmem>>, vector<1x32x32xf32>,
    } else {
    }
    return
  }
  func.func @transform_0(%arg0: i32, %arg1: i32) -> (i32, i32) {
    %c1_i32 = arith.constant 1 : i32
    %0 = arith.muli %arg0, %c1_i32 : i32
    %1 = arith.addi %0, %arg1 : i32
    %c0_i32 = arith.constant 0 : i32
    %2 = arith.minsi %1, %c0_i32 : i32
    %c0_i32_0 = arith.constant 0 : i32
    %c0_i32_1 = arith.constant 0 : i32
    return %2, %c0_i32_0 : i32, i32
  }
  func.func @transform_1(%arg0: i32, %arg1: i32) -> (i32, i32) {
    %c0_i32 = arith.constant 0 : i32
    %c0_i32_0 = arith.constant 0 : i32
    %c0_i32_1 = arith.constant 0 : i32
    return %c0_i32, %c0_i32_0 : i32, i32
  }
  func.func @transform_2(%arg0: i32, %arg1: i32) -> (i32, i32, i32) {
    %c0_i32 = arith.constant 0 : i32
    %c0_i32_0 = arith.constant 0 : i32
    %c0_i32_1 = arith.constant 0 : i32
    return %arg0, %c0_i32, %c0_i32_0 : i32, i32, i32
  }
  func.func @transform_3(%arg0: i32, %arg1: i32) -> (i32, i32, i32) {
    %c0_i32 = arith.constant 0 : i32
    %c0_i32_0 = arith.constant 0 : i32
    %c0_i32_1 = arith.constant 0 : i32
    return %arg0, %c0_i32, %c0_i32_0 : i32, i32, i32
  }
}

</mosaic_0001>

<llo_original>
// kernel: tpu_custom_call.1
$region0: #{tpu_custom_call.1}
  #allocation0 [shape = 'u32[]', space=smem, size = 0x4, offset = 0x4, fixed_abs, tag = 'smem constant byte address 0x4 - core index']
  #allocation1 [shape = 'u32[144,128]{1,0:T(1,128)}', space=vmem, size = 0x12000, scoped, tag = 'internal scratch']
  %s0 = inlined_call_operand.vmem [shape: f32[64,32], index: 0, kind: input, shape index: {}]
  %s1 = inlined_call_operand.vmem [shape: f32[1,32], index: 1, kind: input, shape index: {}]
  %s2 = inlined_call_operand.hbm [shape: f32[1,1,32], index: 2, kind: output, shape index: {0}]
  %s3 = inlined_call_operand.hbm [shape: f32[1,32,32], index: 3, kind: output, shape index: {1}]
  %4 = xla_tuple %s2, %s3
  %s5 = sld [smem:[#allocation0]]
  $region38: #{tpu_custom_call.1} parent=0
    _
  %s7 = ssub.s32 1, %s5
  %s8 = scalar_select 0, %s7, %s5
  $region1: #{tpu_custom_call.1} parent=0
    #allocation2 [shape = 'u8[512]{0}', space=vmem, size = 0x400, scoped, tag = 'output window, operand 0, single buffered']
    #allocation3 [shape = 's32[1]{0}', space=sflag, size = 0x4, scoped, tag = 'scoped memory for tpu_custom_call.1']
    #allocation4 [shape = 'u8[16384]{0}', space=vmem, size = 0x4000, scoped, tag = 'output window, operand 1, single buffered']
    #allocation5 [shape = 's32[1]{0}', space=sflag, size = 0x4, scoped, tag = 'scoped memory for tpu_custom_call.1']
    %9 = vsyncpa [#allocation3], 0
    %10 = vsyncpa [#allocation5], 0
    // Predicated region
    $region2: #{tpu_custom_call.1} parent=1 // pred_check
      _
    $region3: #{tpu_custom_call.1} parent=1 // pred_check_branch
      %12 = sbr.rel (0) target = $region5
    $region4: #{tpu_custom_call.1} parent=1 // pred_region
      %s13 = sadd.s32 0, 0
      %p14 = scmp.lt.s32.totalorder %s13, 0
      %s15 = scalar_select %p14, %s13, 0
      %s16 = smul.u32 8, %s15
      %p17 = scmp.lt.s32.totalorder %s16, 7
      %s18 = scalar_select %p17, %s16, 7
      %s19 = smul.addr %s18, 8
      %s20 = scalar_lea.vmem %s0, %s19
      %s21 = sadd.s32 0, 0
      %p22 = scmp.lt.s32.totalorder %s21, 0
      %s23 = scalar_select %p22, %s21, 0
      %s24 = smul.u32 8, %s23
    $region5: #{tpu_custom_call.1} parent=1 // pred_fallthru
      _
    // Predicated region
    $region6: #{tpu_custom_call.1} parent=1 // pred_check
      _
    $region7: #{tpu_custom_call.1} parent=1 // pred_check_branch
      %26 = sbr.rel (0) target = $region9
    $region8: #{tpu_custom_call.1} parent=1 // pred_region
      _
    $region9: #{tpu_custom_call.1} parent=1 // pred_fallthru
      _
    %s27 = sadd.s32 0, 0
    %p28 = scmp.lt.s32.totalorder %s27, 0
    %s29 = scalar_select %p28, %s27, 0
    %s30 = smul.u32 8, %s29
    %p31 = scmp.lt.s32.totalorder %s30, 7
    %s32 = scalar_select %p31, %s30, 7
    %s33 = smul.addr %s32, 8
    %s34 = scalar_lea.vmem %s0, %s33
    %s35 = sadd.s32 0, 0
    %p36 = scmp.lt.s32.totalorder %s35, 0
    %s37 = scalar_select %p36, %s35, 0
    %s38 = smul.u32 8, %s37
    %p39 = scmp.lt.s32.totalorder %s38, 7
    %s40 = scalar_select %p39, %s38, 7
    %s41 = smul.addr %s40, 8
    %s42 = scalar_lea.vmem %s0, %s41
    %s43 = sadd.s32 0, 0
    %p44 = scmp.lt.s32.totalorder %s43, 0
    %s45 = scalar_select %p44, %s43, 0
    %s46 = smul.u32 8, %s45
    %p47 = scmp.eq.s32.totalorder 0, 0
    // Predicated region
    $region10: #{tpu_custom_call.1} parent=1 // pred_check
      %p48 = pneg %p47
    $region11: #{tpu_custom_call.1} parent=1 // pred_check_branch
      %50 = sbr.rel (%p48) target = $region13
    $region12: #{tpu_custom_call.1} parent=1 // pred_region
      %vm51 = vcmask 253952
      %52 = vst.msk [vmem:[#allocation2] sm:$0x1] %vm51, 0.0
      %vm53 = vcmask 261120
      %54 = vst.msk [vmem:[#allocation4] sm:$0xff] %vm53, 0.0
      %55 = vst.msk [vmem:[#allocation4 + $0x8] sm:$0xff] %vm53, 0.0
      %56 = vst.msk [vmem:[#allocation4 + $0x10] sm:$0xff] %vm53, 0.0
      %57 = vst.msk [vmem:[#allocation4 + $0x18] sm:$0xff] %vm53, 0.0
    $region13: #{tpu_custom_call.1} parent=1 // pred_fallthru
      _
    %s58 = sadd.s32 0, 0
    %s59 = smul.u32 %s58, 64
    %v60 = vld [vmem:[%s42] sm:$0xff]
    %v61 = vld [vmem:[%s42 + $0x8] sm:$0xff]
    %v62 = vld [vmem:[%s42 + $0x10] sm:$0xff]
    %v63 = vld [vmem:[%s42 + $0x18] sm:$0xff]
    %v64 = vld [vmem:[%s42 + $0x20] sm:$0xff]
    %v65 = vld [vmem:[%s42 + $0x28] sm:$0xff]
    %v66 = vld [vmem:[%s42 + $0x30] sm:$0xff]
    %v67 = vld [vmem:[%s42 + $0x38] sm:$0xff]
    %v68 = vld [vmem:[%s1] sm:$0x1]
    %v70 = vlaneseq
    %v71 = vshrl.u32 %v70, 7
    %v72 = vsub.s32 0, %v71
    %v73 = vrot.slane %v68, %v72
    %v75 = vsub.f32 %v60, %v73
    %v76 = vsub.f32 %v61, %v73
    %v77 = vsub.f32 %v62, %v73
    %v78 = vsub.f32 %v63, %v73
    %v79 = vsub.f32 %v64, %v73
    %v80 = vsub.f32 %v65, %v73
    %v81 = vsub.f32 %v66, %v73
    %v82 = vsub.f32 %v67, %v73
    %s83 = sadd.s32 %s59, 64
    %p84 = scmp.le.s32.totalorder %s83, 64
    // Predicated region
    $region14: #{tpu_custom_call.1} parent=1 // pred_check
      %p85 = pneg %p84
    $region15: #{tpu_custom_call.1} parent=1 // pred_check_branch
      %87 = sbr.rel (%p85) target = $region17
    $region16: #{tpu_custom_call.1} parent=1 // pred_region
      %v88 = vld [vmem:[#allocation2] sm:$0x1]
      %vm89 = vcmask 261120
      %v90 = vsel %vm89, %v75, 0.0
      %v91 = vsel %vm89, %v76, 0.0
      %v92 = vadd.f32 %v90, %v91
      %v93 = vsel %vm89, %v77, 0.0
      %v94 = vadd.f32 %v92, %v93
      %v95 = vsel %vm89, %v78, 0.0
      %v96 = vadd.f32 %v94, %v95
      %v97 = vsel %vm89, %v79, 0.0
      %v98 = vadd.f32 %v96, %v97
      %v99 = vsel %vm89, %v80, 0.0
      %v100 = vadd.f32 %v98, %v99
      %v101 = vsel %vm89, %v81, 0.0
      %v102 = vadd.f32 %v100, %v101
      %v103 = vsel %vm89, %v82, 0.0
      %v104 = vadd.f32 %v102, %v103
      %v105 = vrot.slane %v104, 4
      %v106 = vadd.f32 %v104, %v105
      %v107 = vrot.slane %v106, 2
      %v108 = vadd.f32 %v106, %v107
      %v109 = vrot.slane %v108, 1
      %v110 = vadd.f32 %v108, %v109
      %v111 = vadd.f32 %v88, %v110
      %vm112 = vcmask 253952
      %113 = vst.msk [vmem:[#allocation2] sm:$0x1] %vm112, %v111
      %v114 = vld [vmem:[#allocation4] sm:$0xff]
      %v115 = vld [vmem:[#allocation4 + $0x8] sm:$0xff]
      %v116 = vld [vmem:[#allocation4 + $0x10] sm:$0xff]
      %v117 = vld [vmem:[#allocation4 + $0x18] sm:$0xff]
      %118 = vxpose.xlu0.b32.start [1/16] %v75, 128
      %119 = vxpose.xlu0.b32.cont [2/16] %v76, 128
      %120 = vxpose.xlu0.b32.cont [3/16] %v77, 128
      %121 = vxpose.xlu0.b32.cont [4/16] %v78, 128
      %122 = vxpose.xlu0.b32.cont [5/16] %v79, 128
      %123 = vxpose.xlu0.b32.cont [6/16] %v80, 128
      %124 = vxpose.xlu0.b32.cont [7/16] %v81, 128
      %125 = vxpose.xlu0.b32.cont [8/16] %v82, 128
      %126 = vxpose.xlu0.b32.cont [9/16] 0.0, 128
      %127 = vxpose.xlu0.b32.cont [10/16] 0.0, 128
      %128 = vxpose.xlu0.b32.cont [11/16] 0.0, 128
      %129 = vxpose.xlu0.b32.cont [12/16] 0.0, 128
      %130 = vxpose.xlu0.b32.cont [13/16] 0.0, 128
      %131 = vxpose.xlu0.b32.cont [14/16] 0.0, 128
      %132 = vxpose.xlu0.b32.cont [15/16] 0.0, 128
      %133 = vxpose.xlu0.b32.end [16/16] 0.0, 128
      %v134 = vpop.trf.xlu0
      %v135 = vpop.trf.xlu0
      %v136 = vpop.trf.xlu0
      %v137 = vpop.trf.xlu0
      %v138 = vpop.trf.xlu0
      %v139 = vpop.trf.xlu0
      %v140 = vpop.trf.xlu0
      %v141 = vpop.trf.xlu0
      %v142 = vpop.trf.xlu0
      %v143 = vpop.trf.xlu0
      %v144 = vpop.trf.xlu0
      %v145 = vpop.trf.xlu0
      %v146 = vpop.trf.xlu0
      %v147 = vpop.trf.xlu0
      %v148 = vpop.trf.xlu0
      %v149 = vpop.trf.xlu0
      %vm150 = vcmask 523264
      %v152 = vsel %vm150, %v134, 0
      %v155 = vsel %vm150, %v135, 0
      %v158 = vsel %vm150, %v136, 0
      %v161 = vsel %vm150, %v137, 0
      %163 = vmatprep.subr.mxu0 0.0
      %164 = vmatpush1.msra.mxu0 0.0
      %165 = vmatprep.subr.mxu0 0.0
      %166 = vmatpush1.msra.mxu0 0.0
      %167 = vmatprep.subr.mxu0 0.0
      %168 = vmatpush1.msra.mxu0 0.0
      %169 = vmatprep.subr.mxu0 0.0
      %170 = vmatpush1.msra.mxu0 0.0
      %171 = vmatprep.subr.mxu0 0.0
      %172 = vmatpush1.msra.mxu0 0.0
      %173 = vmatprep.subr.mxu0 0.0
      %174 = vmatpush1.msra.mxu0 0.0
      %175 = vmatprep.subr.mxu0 0.0
      %176 = vmatpush1.msra.mxu0 0.0
      %177 = vmatprep.subr.mxu0 0.0
      %178 = vmatpush1.msra.mxu0 0.0
      %179 = vmatprep.subr.mxu0 0.0
      %180 = vmatpush1.msra.mxu0 %v82
      %181 = vmatprep.subr.mxu0 0.0
      %182 = vmatpush1.msra.mxu0 %v81
      %183 = vmatprep.subr.mxu0 0.0
      %184 = vmatpush1.msra.mxu0 %v80
      %185 = vmatprep.subr.mxu0 0.0
      %186 = vmatpush1.msra.mxu0 %v79
      %187 = vmatprep.subr.mxu0 0.0
      %188 = vmatpush1.msra.mxu0 %v78
      %189 = vmatprep.subr.mxu0 0.0
      %190 = vmatpush1.msra.mxu0 %v77
      %191 = vmatprep.subr.mxu0 0.0
      %192 = vmatpush1.msra.mxu0 %v76
      %193 = vmatprep.subr.mxu0 0.0
      %194 = vmatpush1.msra.mxu0 %v75
      %195 = vmatprep.subr.mxu0 0.0
      %196 = vmatpush2.msra.mxu0 0.0
      %197 = vmatprep.subr.mxu0 0.0
      %198 = vmatpush2.msra.mxu0 0.0
      %199 = vmatprep.subr.mxu0 0.0
      %200 = vmatpush2.msra.mxu0 0.0
      %201 = vmatprep.subr.mxu0 0.0
      %202 = vmatpush2.msra.mxu0 0.0
      %203 = vmatprep.subr.mxu0 0.0
      %204 = vmatpush2.msra.mxu0 0.0
      %205 = vmatprep.subr.mxu0 0.0
      %206 = vmatpush2.msra.mxu0 0.0
      %207 = vmatprep.subr.mxu0 0.0
      %208 = vmatpush2.msra.mxu0 0.0
      %209 = vmatprep.subr.mxu0 0.0
      %210 = vmatpush2.msra.mxu0 0.0
      %211 = vmatprep.subr.mxu0 0.0
      %212 = vmatpush2.msra.mxu0 0.0
      %213 = vmatprep.subr.mxu0 0.0
      %214 = vmatpush2.msra.mxu0 0.0
      %215 = vmatprep.subr.mxu0 0.0
      %216 = vmatpush2.msra.mxu0 0.0
      %217 = vmatprep.subr.mxu0 0.0
      %218 = vmatpush2.msra.mxu0 0.0
      %219 = vmatprep.subr.mxu0 0.0
      %220 = vmatpush2.msra.mxu0 0.0
      %221 = vmatprep.subr.mxu0 0.0
      %222 = vmatpush2.msra.mxu0 0.0
      %223 = vmatprep.subr.mxu0 0.0
      %224 = vmatpush2.msra.mxu0 0.0
      %225 = vmatprep.subr.mxu0 0.0
      %226 = vmatpush2.msra.mxu0 0.0
      %227 = vmatprep.mubr.f32.mxu0 0.0
      %228 = vmatmul.mubr.f32.gmra.mxu0 %v152
      %v229 = vpop.f32.mrf.mxu0
      %v230 = vadd.f32 0.0, %v229
      %v231 = vpop.f32.mrf.mxu0
      %232 = vmatprep.mubr.f32.mxu0 0.0
      %233 = vmatmul.mubr.f32.gmra.mxu0 %v155
      %v234 = vpop.f32.mrf.mxu0
      %v235 = vadd.f32 0.0, %v234
      %v236 = vpop.f32.mrf.mxu0
      %237 = vmatprep.mubr.f32.mxu0 0.0
      %238 = vmatmul.mubr.f32.gmra.mxu0 %v158
      %v239 = vpop.f32.mrf.mxu0
      %v240 = vadd.f32 0.0, %v239
      %v241 = vpop.f32.mrf.mxu0
      %242 = vmatprep.mubr.f32.mxu0 0.0
      %243 = vmatmul.mubr.f32.gmra.mxu0 %v161
      %v244 = vpop.f32.mrf.mxu0
      %v245 = vadd.f32 0.0, %v244
      %v246 = vpop.f32.mrf.mxu0
      %247 = vdwg.mxu0
      %v248 = vadd.f32 %v114, %v230
      %v249 = vadd.f32 %v115, %v235
      %v250 = vadd.f32 %v116, %v240
      %v251 = vadd.f32 %v117, %v245
      %252 = vst.msk [vmem:[#allocation4] sm:$0xff] %vm89, %v248
      %253 = vst.msk [vmem:[#allocation4 + $0x8] sm:$0xff] %vm89, %v249
      %254 = vst.msk [vmem:[#allocation4 + $0x10] sm:$0xff] %vm89, %v250
      %255 = vst.msk [vmem:[#allocation4 + $0x18] sm:$0xff] %vm89, %v251
    $region17: #{tpu_custom_call.1} parent=1 // pred_fallthru
      _
    %p256 = scmp.gt.s32.totalorder %s83, 64
    // Predicated region
    $region18: #{tpu_custom_call.1} parent=1 // pred_check
      %p257 = pneg %p256
    $region19: #{tpu_custom_call.1} parent=1 // pred_check_branch
      %259 = sbr.rel (%p257) target = $region21
    $region20: #{tpu_custom_call.1} parent=1 // pred_region
      %v260 = vlaneseq
      %v261 = vshrl.u32 %v260, 7
      %v262 = vadd.s32 %v261, 8
      %v263 = vadd.s32 %v261, 16
      %v264 = vadd.s32 %v261, 24
      %v265 = vadd.s32 %v261, 32
      %v266 = vadd.s32 %v261, 40
      %v267 = vadd.s32 %v261, 48
      %v268 = vadd.s32 %v261, 56
      %v269 = vstv %s59
      %v270 = vadd.s32 %v269, %v261
      %v271 = vadd.s32 %v269, %v262
      %v272 = vadd.s32 %v269, %v263
      %v273 = vadd.s32 %v269, %v264
      %v274 = vadd.s32 %v269, %v265
      %v275 = vadd.s32 %v269, %v266
      %v276 = vadd.s32 %v269, %v267
      %v277 = vadd.s32 %v269, %v268
      %vm278 = vcmp.lt.s32.totalorder %v270, 64
      %vm279 = vcmp.lt.s32.totalorder %v271, 64
      %vm280 = vcmp.lt.s32.totalorder %v272, 64
      %vm281 = vcmp.lt.s32.totalorder %v273, 64
      %vm282 = vcmp.lt.s32.totalorder %v274, 64
      %vm283 = vcmp.lt.s32.totalorder %v275, 64
      %vm284 = vcmp.lt.s32.totalorder %v276, 64
      %vm285 = vcmp.lt.s32.totalorder %v277, 64
      %v286 = vsel %vm278, 1, 0
      %v287 = vsel %vm279, 1, 0
      %v288 = vsel %vm280, 1, 0
      %v289 = vsel %vm281, 1, 0
      %v290 = vsel %vm282, 1, 0
      %v291 = vsel %vm283, 1, 0
      %v292 = vsel %vm284, 1, 0
      %v293 = vsel %vm285, 1, 0
      %vm294 = vcmp.eq.s32.totalorder %v286, 1
      %vm295 = vcmp.eq.s32.totalorder %v287, 1
      %vm296 = vcmp.eq.s32.totalorder %v288, 1
      %vm297 = vcmp.eq.s32.totalorder %v289, 1
      %vm298 = vcmp.eq.s32.totalorder %v290, 1
      %vm299 = vcmp.eq.s32.totalorder %v291, 1
      %vm300 = vcmp.eq.s32.totalorder %v292, 1
      %vm301 = vcmp.eq.s32.totalorder %v293, 1
      %v302 = vsel %vm294, %v75, 0.0
      %v303 = vsel %vm295, %v76, 0.0
      %v304 = vsel %vm296, %v77, 0.0
      %v305 = vsel %vm297, %v78, 0.0
      %v306 = vsel %vm298, %v79, 0.0
      %v307 = vsel %vm299, %v80, 0.0
      %v308 = vsel %vm300, %v81, 0.0
      %v309 = vsel %vm301, %v82, 0.0
      %v310 = vld [vmem:[#allocation2] sm:$0x1]
      %vm311 = vcmask 261120
      %v312 = vsel %vm311, %v302, 0.0
      %v313 = vsel %vm311, %v303, 0.0
      %v314 = vadd.f32 %v312, %v313
      %v315 = vsel %vm311, %v304, 0.0
      %v316 = vadd.f32 %v314, %v315
      %v317 = vsel %vm311, %v305, 0.0
      %v318 = vadd.f32 %v316, %v317
      %v319 = vsel %vm311, %v306, 0.0
      %v320 = vadd.f32 %v318, %v319
      %v321 = vsel %vm311, %v307, 0.0
      %v322 = vadd.f32 %v320, %v321
      %v323 = vsel %vm311, %v308, 0.0
      %v324 = vadd.f32 %v322, %v323
      %v325 = vsel %vm311, %v309, 0.0
      %v326 = vadd.f32 %v324, %v325
      %v327 = vrot.slane %v326, 4
      %v328 = vadd.f32 %v326, %v327
      %v329 = vrot.slane %v328, 2
      %v330 = vadd.f32 %v328, %v329
      %v331 = vrot.slane %v330, 1
      %v332 = vadd.f32 %v330, %v331
      %v333 = vadd.f32 %v310, %v332
      %vm334 = vcmask 253952
      %335 = vst.msk [vmem:[#allocation2] sm:$0x1] %vm334, %v333
      %v336 = vld [vmem:[#allocation4] sm:$0xff]
      %v337 = vld [vmem:[#allocation4 + $0x8] sm:$0xff]
      %v338 = vld [vmem:[#allocation4 + $0x10] sm:$0xff]
      %v339 = vld [vmem:[#allocation4 + $0x18] sm:$0xff]
      %340 = vxpose.xlu0.b32.start [1/16] %v302, 128
      %341 = vxpose.xlu0.b32.cont [2/16] %v303, 128
      %342 = vxpose.xlu0.b32.cont [3/16] %v304, 128
      %343 = vxpose.xlu0.b32.cont [4/16] %v305, 128
      %344 = vxpose.xlu0.b32.cont [5/16] %v306, 128
      %345 = vxpose.xlu0.b32.cont [6/16] %v307, 128
      %346 = vxpose.xlu0.b32.cont [7/16] %v308, 128
      %347 = vxpose.xlu0.b32.cont [8/16] %v309, 128
      %348 = vxpose.xlu0.b32.cont [9/16] 0.0, 128
      %349 = vxpose.xlu0.b32.cont [10/16] 0.0, 128
      %350 = vxpose.xlu0.b32.cont [11/16] 0.0, 128
      %351 = vxpose.xlu0.b32.cont [12/16] 0.0, 128
      %352 = vxpose.xlu0.b32.cont [13/16] 0.0, 128
      %353 = vxpose.xlu0.b32.cont [14/16] 0.0, 128
      %354 = vxpose.xlu0.b32.cont [15/16] 0.0, 128
      %355 = vxpose.xlu0.b32.end [16/16] 0.0, 128
      %v356 = vpop.trf.xlu0
      %v357 = vpop.trf.xlu0
      %v358 = vpop.trf.xlu0
      %v359 = vpop.trf.xlu0
      %v360 = vpop.trf.xlu0
      %v361 = vpop.trf.xlu0
      %v362 = vpop.trf.xlu0
      %v363 = vpop.trf.xlu0
      %v364 = vpop.trf.xlu0
      %v365 = vpop.trf.xlu0
      %v366 = vpop.trf.xlu0
      %v367 = vpop.trf.xlu0
      %v368 = vpop.trf.xlu0
      %v369 = vpop.trf.xlu0
      %v370 = vpop.trf.xlu0
      %v371 = vpop.trf.xlu0
      %vm372 = vcmask 523264
      %v374 = vsel %vm372, %v356, 0
      %v377 = vsel %vm372, %v357, 0
      %v380 = vsel %vm372, %v358, 0
      %v383 = vsel %vm372, %v359, 0
      %385 = vmatprep.subr.mxu0 0.0
      %386 = vmatpush1.msra.mxu0 0.0
      %387 = vmatprep.subr.mxu0 0.0
      %388 = vmatpush1.msra.mxu0 0.0
      %389 = vmatprep.subr.mxu0 0.0
      %390 = vmatpush1.msra.mxu0 0.0
      %391 = vmatprep.subr.mxu0 0.0
      %392 = vmatpush1.msra.mxu0 0.0
      %393 = vmatprep.subr.mxu0 0.0
      %394 = vmatpush1.msra.mxu0 0.0
      %395 = vmatprep.subr.mxu0 0.0
      %396 = vmatpush1.msra.mxu0 0.0
      %397 = vmatprep.subr.mxu0 0.0
      %398 = vmatpush1.msra.mxu0 0.0
      %399 = vmatprep.subr.mxu0 0.0
      %400 = vmatpush1.msra.mxu0 0.0
      %401 = vmatprep.subr.mxu0 0.0
      %402 = vmatpush1.msra.mxu0 %v309
      %403 = vmatprep.subr.mxu0 0.0
      %404 = vmatpush1.msra.mxu0 %v308
      %405 = vmatprep.subr.mxu0 0.0
      %406 = vmatpush1.msra.mxu0 %v307
      %407 = vmatprep.subr.mxu0 0.0
      %408 = vmatpush1.msra.mxu0 %v306
      %409 = vmatprep.subr.mxu0 0.0
      %410 = vmatpush1.msra.mxu0 %v305
      %411 = vmatprep.subr.mxu0 0.0
      %412 = vmatpush1.msra.mxu0 %v304
      %413 = vmatprep.subr.mxu0 0.0
      %414 = vmatpush1.msra.mxu0 %v303
      %415 = vmatprep.subr.mxu0 0.0
      %416 = vmatpush1.msra.mxu0 %v302
      %417 = vmatprep.subr.mxu0 0.0
      %418 = vmatpush2.msra.mxu0 0.0
      %419 = vmatprep.subr.mxu0 0.0
      %420 = vmatpush2.msra.mxu0 0.0
      %421 = vmatprep.subr.mxu0 0.0
      %422 = vmatpush2.msra.mxu0 0.0
      %423 = vmatprep.subr.mxu0 0.0
      %424 = vmatpush2.msra.mxu0 0.0
      %425 = vmatprep.subr.mxu0 0.0
      %426 = vmatpush2.msra.mxu0 0.0
      %427 = vmatprep.subr.mxu0 0.0
      %428 = vmatpush2.msra.mxu0 0.0
      %429 = vmatprep.subr.mxu0 0.0
      %430 = vmatpush2.msra.mxu0 0.0
      %431 = vmatprep.subr.mxu0 0.0
      %432 = vmatpush2.msra.mxu0 0.0
      %433 = vmatprep.subr.mxu0 0.0
      %434 = vmatpush2.msra.mxu0 0.0
      %435 = vmatprep.subr.mxu0 0.0
      %436 = vmatpush2.msra.mxu0 0.0
      %437 = vmatprep.subr.mxu0 0.0
      %438 = vmatpush2.msra.mxu0 0.0
      %439 = vmatprep.subr.mxu0 0.0
      %440 = vmatpush2.msra.mxu0 0.0
      %441 = vmatprep.subr.mxu0 0.0
      %442 = vmatpush2.msra.mxu0 0.0
      %443 = vmatprep.subr.mxu0 0.0
      %444 = vmatpush2.msra.mxu0 0.0
      %445 = vmatprep.subr.mxu0 0.0
      %446 = vmatpush2.msra.mxu0 0.0
      %447 = vmatprep.subr.mxu0 0.0
      %448 = vmatpush2.msra.mxu0 0.0
      %449 = vmatprep.mubr.f32.mxu0 0.0
      %450 = vmatmul.mubr.f32.gmra.mxu0 %v374
      %v451 = vpop.f32.mrf.mxu0
      %v452 = vadd.f32 0.0, %v451
      %v453 = vpop.f32.mrf.mxu0
      %454 = vmatprep.mubr.f32.mxu0 0.0
      %455 = vmatmul.mubr.f32.gmra.mxu0 %v377
      %v456 = vpop.f32.mrf.mxu0
      %v457 = vadd.f32 0.0, %v456
      %v458 = vpop.f32.mrf.mxu0
      %459 = vmatprep.mubr.f32.mxu0 0.0
      %460 = vmatmul.mubr.f32.gmra.mxu0 %v380
      %v461 = vpop.f32.mrf.mxu0
      %v462 = vadd.f32 0.0, %v461
      %v463 = vpop.f32.mrf.mxu0
      %464 = vmatprep.mubr.f32.mxu0 0.0
      %465 = vmatmul.mubr.f32.gmra.mxu0 %v383
      %v466 = vpop.f32.mrf.mxu0
      %v467 = vadd.f32 0.0, %v466
      %v468 = vpop.f32.mrf.mxu0
      %469 = vdwg.mxu0
      %v470 = vadd.f32 %v336, %v452
      %v471 = vadd.f32 %v337, %v457
      %v472 = vadd.f32 %v338, %v462
      %v473 = vadd.f32 %v339, %v467
      %474 = vst.msk [vmem:[#allocation4] sm:$0xff] %vm311, %v470
      %475 = vst.msk [vmem:[#allocation4 + $0x8] sm:$0xff] %vm311, %v471
      %476 = vst.msk [vmem:[#allocation4 + $0x10] sm:$0xff] %vm311, %v472
      %477 = vst.msk [vmem:[#allocation4 + $0x18] sm:$0xff] %vm311, %v473
    $region21: #{tpu_custom_call.1} parent=1 // pred_fallthru
      _
    // Predicated region
    $region22: #{tpu_custom_call.1} parent=1 // pred_check
      _
    $region23: #{tpu_custom_call.1} parent=1 // pred_check_branch
      %479 = sbr.rel (0) target = $region25
    $region24: #{tpu_custom_call.1} parent=1 // pred_region
      %s481 = ssub.s32 16, 16
      %482 = vsyncadd [#allocation3], %s481
      %s484 = sshll.u32 [#allocation2], 4
      %s485 = int_to_ptr.vmem [resolvable:$true] %s484
      %487 = dma.vmem_to_hbm [thread:$0]  %s485, 16, %s2, [#allocation3]
    $region25: #{tpu_custom_call.1} parent=1 // pred_fallthru
      _
    // Predicated region
    $region26: #{tpu_custom_call.1} parent=1 // pred_check
      _
    $region27: #{tpu_custom_call.1} parent=1 // pred_check_branch
      %489 = sbr.rel (0) target = $region29
    $region28: #{tpu_custom_call.1} parent=1 // pred_region
      %s491 = ssub.s32 512, 512
      %492 = vsyncadd [#allocation5], %s491
      %s493 = sshll.u32 [#allocation4], 4
      %s494 = int_to_ptr.vmem [resolvable:$true] %s493
      %499 = dma.vmem_to_hbm [thread:$0]  %s494, 512, %s3, [#allocation5], 128, 128, 8
    $region29: #{tpu_custom_call.1} parent=1 // pred_fallthru
      _
    // Predicated region
    $region30: #{tpu_custom_call.1} parent=1 // pred_check
      _
    $region31: #{tpu_custom_call.1} parent=1 // pred_check_branch
      %501 = sbr.rel (0) target = $region33
    $region32: #{tpu_custom_call.1} parent=1 // pred_region
      %502 = dma.done [#allocation3], 16
    $region33: #{tpu_custom_call.1} parent=1 // pred_fallthru
      _
    // Predicated region
    $region34: #{tpu_custom_call.1} parent=1 // pred_check
      _
    $region35: #{tpu_custom_call.1} parent=1 // pred_check_branch
      %504 = sbr.rel (0) target = $region37
    $region36: #{tpu_custom_call.1} parent=1 // pred_region
      %505 = dma.done [#allocation5], 512
    $region37: #{tpu_custom_call.1} parent=1 // pred_fallthru
      _
    %506 = vsyncpa [#allocation3], 1
    %507 = vsyncpa [#allocation5], 1

</llo_original>
